<compile_context>
chip_gen: v6e
topology: v6e:2x2x1
jax: 0.10.0
libtpu: 0.0.40
codegen_flags: <defaults>
</compile_context>

<pallas_src>
import functools

import jax
import jax.numpy as jnp
from jax.experimental import pallas as pl
from jax.experimental.pallas import tpu as pltpu


def soft_cesa_kernel(x_ref, f3_ref, w_ref, b_ref, out_ref, *, inchannel, pp,
                     matmul_dtype):
    """One batch tile: channel max/mean, f2*f3, one K=3*pp MXU dot + bias, sigmoid."""
    # x_ref: (TB, C*P*P) lane-dense. Channel c lives at lanes [c*pp:(c+1)*pp]
    # (pp = 256 -> 128-aligned static slices, no relayout); the channel
    # reduction is a short unrolled elementwise loop on the VPU.
    x0 = x_ref[:, 0:pp].astype(jnp.float32)
    f1 = x0
    acc = x0
    for c in range(1, inchannel):                      # static unroll, C is tiny
        xc = x_ref[:, c * pp:(c + 1) * pp].astype(jnp.float32)
        f1 = jnp.maximum(f1, xc)
        acc = acc + xc
    f2 = acc * (1.0 / inchannel)                       # reciprocal const, no divide
    f3 = f2 * f3_ref[...].astype(jnp.float32)

    # One (TB, 3*pp) x (3*pp, pp) MXU matmul with f32 accumulation.
    f_cat = jnp.concatenate([f1, f2, f3], axis=-1).astype(matmul_dtype)
    logits = jnp.dot(f_cat, w_ref[...], preferred_element_type=jnp.float32) + b_ref[...]
    out_ref[...] = jax.nn.sigmoid(logits).astype(out_ref.dtype)   # (TB, P*P) lane-dense


def prepare_soft_cesa_params(conv_w, conv_b, ksize, *, matmul_dtype=jnp.bfloat16):
    """One-time weight prep (do NOT redo per call): PyTorch conv weight
    (P*P, 3, P, P) -> single (3*P*P, P*P) matmul weight (input ordering is
    [f1 | f2 | f2*f3] flattened, matching the in-kernel lane concat), plus a
    (1, P*P) f32 bias. bf16 operands are the production default (native MXU
    input on all generations, f32 accumulate; v5e runs f32 matmul multi-pass)."""
    psize = int(ksize[-1])
    pp = psize * psize
    w_cat = jnp.transpose(conv_w.reshape(pp, 3 * pp)).astype(matmul_dtype)   # (3*pp, pp)
    bias = conv_b.reshape(1, pp).astype(jnp.float32)
    return w_cat, bias


def _pick_batch_tile(batch):
    # Largest sublane-aligned tile, capped at 1024 rows (~13.5 MiB double-buffered
    # f32 footprint -> fits the scoped-VMEM default on v5e/v6e/v7x; v7x's 64 MiB
    # physical VMEM is NOT the constraint at these sizes).  For B >= 16 keep at
    # least 2 grid steps so the "parallel" batch axis shards across v7x's two TCs.
    if batch < 16:
        return batch
    cap = min(1024, batch // 2)
    tb = (cap // 8) * 8
    # Prefer an aligned tile that divides the batch (avoids the padding copy).
    for cand in range(tb, 7, -8):
        if batch % cand == 0:
            return cand
    return max(tb, 8)


@functools.partial(jax.jit,
                   static_argnames=("ksize", "tb", "out_dtype", "vmem_limit_bytes"))
def soft_cesa(x, f3, w, bias, *, ksize, tb=None, out_dtype=None,
              vmem_limit_bytes=None):
    inchannel = int(ksize[0])
    psize = int(ksize[-1])
    pp = psize * psize
    B, C, H, W = x.shape
    assert C == inchannel and H == psize and W == psize, "module implies H == W == P"

    if out_dtype is None:
        out_dtype = x.dtype
    if tb is None:
        tb = _pick_batch_tile(B)
    assert tb >= 1 and (tb == B or tb % 8 == 0), \
        "batch tile must be sublane-aligned (multiple of 8) or equal B"

    # Lane-dense views: contiguous reshapes only — NO HBM transpose/copy of x.
    x_flat = x.reshape(B, inchannel * pp)              # (B, C*P*P)
    f3_ld = f3.reshape(B, pp)                          # (B, P*P)

    # Zero-pad batch to a tile multiple (copies only when B % tb != 0).
    num_steps = pl.cdiv(B, tb)
    B_pad = num_steps * tb
    if B_pad != B:
        x_flat = jnp.pad(x_flat, ((0, B_pad - B), (0, 0)))
        f3_ld = jnp.pad(f3_ld, ((0, B_pad - B), (0, 0)))

    kernel = functools.partial(soft_cesa_kernel, inchannel=inchannel, pp=pp,
                               matmul_dtype=w.dtype)

    out_bytes = jnp.dtype(out_dtype).itemsize
    bytes_accessed = (x_flat.size * x_flat.dtype.itemsize
                      + f3_ld.size * f3_ld.dtype.itemsize
                      + w.size * w.dtype.itemsize
                      + bias.size * bias.dtype.itemsize
                      + B_pad * pp * out_bytes)
    cost = pl.CostEstimate(flops=2 * B_pad * 3 * pp * pp + 6 * B_pad * pp,
                           transcendentals=B_pad * pp,
                           bytes_accessed=int(bytes_accessed))

    # Double-buffered VMEM footprint; raise the scoped limit only if we would
    # exceed the most conservative default (v5e: 16 MiB).
    footprint = (2 * tb * (inchannel * pp * x_flat.dtype.itemsize
                           + pp * f3_ld.dtype.itemsize
                           + pp * out_bytes)
                 + 2 * (3 * pp * pp * w.dtype.itemsize + pp * 4))
    if vmem_limit_bytes is None and footprint > 14 * 1024 * 1024:
        vmem_limit_bytes = min(int(footprint * 3 // 2), 48 * 1024 * 1024)

    cp = dict(dimension_semantics=("parallel",))       # batch axis -> megacore on v7x
    if vmem_limit_bytes is not None:
        cp["vmem_limit_bytes"] = int(vmem_limit_bytes)

    smap = pl.pallas_call(
        kernel,
        out_shape=jax.ShapeDtypeStruct((B_pad, pp), out_dtype),
        grid_spec=pltpu.PrefetchScalarGridSpec(
            num_scalar_prefetch=0,
            grid=(num_steps,),
            in_specs=[
                pl.BlockSpec((tb, inchannel * pp), lambda i: (i, 0)),  # x (batch-tiled)
                pl.BlockSpec((tb, pp), lambda i: (i, 0)),              # f3 (batch-tiled)
                pl.BlockSpec((3 * pp, pp), lambda i: (0, 0)),          # W (VMEM-resident)
                pl.BlockSpec((1, pp), lambda i: (0, 0)),               # bias (resident)
            ],
            out_specs=pl.BlockSpec((tb, pp), lambda i: (i, 0)),
        ),
        compiler_params=pltpu.CompilerParams(**cp),
        cost_estimate=cost,
    )(x_flat, f3_ld, w, bias)

    # Channel repeat + NCHW reshape kept OUTSIDE the kernel: pure broadcast that
    # XLA fuses into the consumer; kernel writeback is 1/C of the naive bytes.
    smap = smap[:B].reshape(B, 1, psize, psize)
    return jnp.broadcast_to(smap, (B, inchannel, psize, psize))


def soft_cesa_reference(x, f3, conv_w, conv_b, ksize):
    """Pure-JAX f32 reference mirroring the PyTorch SoftCESA.forward."""
    inchannel = ksize[0]
    psize = ksize[-1]
    B = x.shape[0]
    f1 = jnp.max(x, axis=1, keepdims=True)
    f2 = jnp.sum(x, axis=1, keepdims=True) / inchannel
    f3 = f2 * f3
    f = jnp.concatenate([f1, f2, f3], axis=1)            # (B, 3, P, P)
    fvec = f.reshape(B, 3 * psize * psize)
    wmat = conv_w.reshape(psize * psize, 3 * psize * psize)
    out = fvec @ wmat.T + conv_b
    s = jax.nn.sigmoid(out).reshape(B, 1, psize, psize)
    return jnp.broadcast_to(s, (B, inchannel, psize, psize))


if __name__ == "__main__":
    ksize = (4, 16)          # inchannel = 4, psize = 16
    B, C, P = 2, ksize[0], ksize[-1]

    key = jax.random.PRNGKey(0)
    kx, kf3, kw, kb, kx2, kf2 = jax.random.split(key, 6)

    x = jax.random.normal(kx, (B, C, P, P), dtype=jnp.float32)
    f3 = jax.random.normal(kf3, (B, 1, P, P), dtype=jnp.float32)

    # Deterministic synthetic params; shapes match nn.Conv2d(3, P*P, (P, P)).
    fan_in = 3 * P * P
    bound = float(fan_in) ** -0.5
    conv_w = jax.random.uniform(kw, (P * P, 3, P, P), jnp.float32, -bound, bound)
    conv_b = jax.random.uniform(kb, (P * P,), jnp.float32, -bound, bound)

    ref = soft_cesa_reference(x, f3, conv_w, conv_b, ksize)

    # 1) exact f32 path (f32 inputs, f32 matmul operands, f32 map)
    w_f32, b_f32 = prepare_soft_cesa_params(conv_w, conv_b, ksize,
                                            matmul_dtype=jnp.float32)
    out = jax.block_until_ready(soft_cesa(x, f3, w_f32, b_f32, ksize=ksize))
    assert out.shape == (B, C, P, P)
    assert jnp.allclose(out, ref, atol=1e-5, rtol=1e-5), "f32 kernel mismatch vs reference"

    # 2) production path: bf16 inputs/outputs + bf16 MXU operands, f32 accumulate
    #    (deliberate precision choice — roughly halves HBM bytes on a mem-bound op).
    w_bf, b_bf = prepare_soft_cesa_params(conv_w, conv_b, ksize,
                                          matmul_dtype=jnp.bfloat16)
    x_bf = x.astype(jnp.bfloat16)
    f3_bf = f3.astype(jnp.bfloat16)
    out_bf = jax.block_until_ready(
        soft_cesa(x_bf, f3_bf, w_bf, b_bf, ksize=ksize, out_dtype=jnp.bfloat16))
    ref_bf = soft_cesa_reference(x_bf.astype(jnp.float32), f3_bf.astype(jnp.float32),
                                 conv_w, conv_b, ksize)
    assert jnp.allclose(out_bf.astype(jnp.float32), ref_bf, atol=2e-2, rtol=2e-2), \
        "bf16 kernel mismatch vs reference"

    # 3) multi-step batch grid with a non-divisible batch (exercises batch tiling,
    #    VMEM-resident weights, and the zero-padded tail).
    B2 = 20
    x2 = jax.random.normal(kx2, (B2, C, P, P), dtype=jnp.float32)
    f3_2 = jax.random.normal(kf2, (B2, 1, P, P), dtype=jnp.float32)
    out2 = jax.block_until_ready(soft_cesa(x2, f3_2, w_f32, b_f32, ksize=ksize, tb=8))
    ref2 = soft_cesa_reference(x2, f3_2, conv_w, conv_b, ksize)
    assert out2.shape == (B2, C, P, P)
    assert jnp.allclose(out2, ref2, atol=1e-5, rtol=1e-5), "tiled kernel mismatch vs reference"

    print("KERNEL_OK")
</pallas_src>

<mosaic_0001>
module attributes {stable_mosaic.version = 11 : i64} {
  func.func @soft_cesa_kernel(%arg0: i32, %arg1: memref<2x1024xf32, #tpu.memory_space<vmem>>, %arg2: memref<2x256xf32, #tpu.memory_space<vmem>>, %arg3: memref<768x256xf32, #tpu.memory_space<vmem>>, %arg4: memref<1x256xf32, #tpu.memory_space<vmem>>, %arg5: memref<2x256xf32, #tpu.memory_space<vmem>>) attributes {dimension_semantics = [#tpu.dimension_semantics<parallel>], iteration_bounds = array<i64: 1>, scalar_prefetch = 0 : i64, scratch_operands = 0 : i64, tpu.core_type = #tpu.core_type<tc>, window_params = [{transform_indices = @transform_0, window_bounds = array<i64: 2, 1024>}, {transform_indices = @transform_1, window_bounds = array<i64: 2, 256>}, {pipeline_mode = #tpu.pipeline_mode<synchronous>, transform_indices = @transform_2, window_bounds = array<i64: 768, 256>}, {pipeline_mode = #tpu.pipeline_mode<synchronous>, transform_indices = @transform_3, window_bounds = array<i64: 1, 256>}, {transform_indices = @transform_4, window_bounds = array<i64: 2, 256>}]} {
    %c0 = arith.constant 0 : index
    %c0_0 = arith.constant 0 : index
    %0 = vector.load %arg1[%c0, %c0_0] : memref<2x1024xf32, #tpu.memory_space<vmem>>, vector<2x256xf32>
    %c0_1 = arith.constant 0 : index
    %c256 = arith.constant 256 : index
    %1 = vector.load %arg1[%c0_1, %c256] : memref<2x1024xf32, #tpu.memory_space<vmem>>, vector<2x256xf32>
    %2 = arith.maximumf %0, %1 : vector<2x256xf32>
    %3 = arith.addf %0, %1 : vector<2x256xf32>
    %c0_2 = arith.constant 0 : index
    %c512 = arith.constant 512 : index
    %4 = vector.load %arg1[%c0_2, %c512] : memref<2x1024xf32, #tpu.memory_space<vmem>>, vector<2x256xf32>
    %5 = arith.maximumf %2, %4 : vector<2x256xf32>
    %6 = arith.addf %3, %4 : vector<2x256xf32>
    %c0_3 = arith.constant 0 : index
    %c768 = arith.constant 768 : index
    %7 = vector.load %arg1[%c0_3, %c768] : memref<2x1024xf32, #tpu.memory_space<vmem>>, vector<2x256xf32>
    %8 = arith.maximumf %5, %7 : vector<2x256xf32>
    %9 = arith.addf %6, %7 : vector<2x256xf32>
    %cst = arith.constant 2.500000e-01 : f32
    %10 = vector.broadcast %cst : f32 to vector<2x256xf32>
    %11 = arith.mulf %9, %10 : vector<2x256xf32>
    %c0_4 = arith.constant 0 : index
    %c0_5 = arith.constant 0 : index
    %12 = vector.load %arg2[%c0_4, %c0_5] : memref<2x256xf32, #tpu.memory_space<vmem>>, vector<2x256xf32>
    %13 = arith.mulf %11, %12 : vector<2x256xf32>
    %14 = tpu.concatenate %8, %11, %13 in 1 : vector<2x256xf32>, vector<2x256xf32>, vector<2x256xf32> -> vector<2x768xf32>
    %c0_6 = arith.constant 0 : index
    %c0_7 = arith.constant 0 : index
    %15 = vector.load %arg3[%c0_6, %c0_7] : memref<768x256xf32, #tpu.memory_space<vmem>>, vector<768x256xf32>
    %cst_8 = arith.constant dense<0.000000e+00> : vector<2x256xf32>
    %16 = tpu.matmul %14, %15, %cst_8 {dimension_numbers = #tpu.dot_dimension_numbers<[1], [0], [0], [1], [0, 0, 1, 1], [], []>} : vector<2x768xf32>, vector<768x256xf32>, vector<2x256xf32> -> vector<2x256xf32>
    %c0_9 = arith.constant 0 : index
    %c0_10 = arith.constant 0 : index
    %17 = vector.load %arg4[%c0_9, %c0_10] : memref<1x256xf32, #tpu.memory_space<vmem>>, vector<1x256xf32>
    %18 = vector.broadcast %17 : vector<1x256xf32> to vector<2x256xf32>
    %19 = arith.addf %16, %18 : vector<2x256xf32>
    %20 = arith.negf %19 : vector<2x256xf32>
    %21 = math.exp %20 : vector<2x256xf32>
    %cst_11 = arith.constant 1.000000e+00 : f32
    %22 = vector.broadcast %cst_11 : f32 to vector<2x256xf32>
    %23 = arith.addf %22, %21 : vector<2x256xf32>
    %24 = arith.divf %22, %23 : vector<2x256xf32>
    %c0_12 = arith.constant 0 : index
    %c0_13 = arith.constant 0 : index
    %25 = vector.load %arg5[%c0_12, %c0_13] : memref<2x256xf32, #tpu.memory_space<vmem>>, vector<2x256xf32>
    tpu.vector_store %arg5[%c0_12, %c0_13], %24 {strides = array<i32>} : memref<2x256xf32, #tpu.memory_space<vmem>>, vector<2x256xf32>,
    return
  }
  func.func @transform_0(%arg0: i32) -> (i32, i32) {
    %c0_i32 = arith.constant 0 : i32
    %c0_i32_0 = arith.constant 0 : i32
    return %arg0, %c0_i32 : i32, i32
  }
  func.func @transform_1(%arg0: i32) -> (i32, i32) {
    %c0_i32 = arith.constant 0 : i32
    %c0_i32_0 = arith.constant 0 : i32
    return %arg0, %c0_i32 : i32, i32
  }
  func.func @transform_2(%arg0: i32) -> (i32, i32) {
    %c0_i32 = arith.constant 0 : i32
    %c0_i32_0 = arith.constant 0 : i32
    %c0_i32_1 = arith.constant 0 : i32
    return %c0_i32, %c0_i32_0 : i32, i32
  }
  func.func @transform_3(%arg0: i32) -> (i32, i32) {
    %c0_i32 = arith.constant 0 : i32
    %c0_i32_0 = arith.constant 0 : i32
    %c0_i32_1 = arith.constant 0 : i32
    return %c0_i32, %c0_i32_0 : i32, i32
  }
  func.func @transform_4(%arg0: i32) -> (i32, i32) {
    %c0_i32 = arith.constant 0 : i32
    %c0_i32_0 = arith.constant 0 : i32
    return %arg0, %c0_i32 : i32, i32
  }
}

</mosaic_0001>

<llo_original>
// kernel: soft_cesa.1
$region0: #{soft_cesa.1}
  #allocation0 [shape = 'u32[]', space=smem, size = 0x4, offset = 0x4, fixed_abs, tag = 'smem constant byte address 0x4 - core index']
  #allocation1 [shape = 'u32[144,128]{1,0:T(1,128)}', space=vmem, size = 0x12000, scoped, tag = 'internal scratch']
  %s0 = inlined_call_operand.vmem [shape: f32[2,1024], index: 0, kind: input, shape index: {}]
  %s1 = inlined_call_operand.vmem [shape: f32[2,256], index: 1, kind: input, shape index: {}]
  %s2 = inlined_call_operand.hbm [shape: f32[768,256], index: 2, kind: input, shape index: {}]
  %s3 = inlined_call_operand.vmem [shape: f32[1,256], index: 3, kind: input, shape index: {}]
  %s4 = inlined_call_operand.vmem [shape: f32[2,256], index: 4, kind: output, shape index: {}]
  %s5 = sld [smem:[#allocation0]]
  $region30: #{soft_cesa.1} parent=0
    _
  %s7 = ssub.s32 1, %s5
  %s8 = scalar_select 0, %s7, %s5
  $region1: #{soft_cesa.1} parent=0
    #allocation2 [shape = 'u8[786432]{0}', space=vmem, size = 0xc0000, scoped, tag = 'input window, operand 2, single buffered']
    #allocation3 [shape = 's32[1]{0}', space=sflag, size = 0x4, scoped, tag = 'scoped memory for soft_cesa.1']
    %9 = vsyncpa [#allocation3], 0
    // Predicated region
    $region2: #{soft_cesa.1} parent=1 // pred_check
      _
    $region3: #{soft_cesa.1} parent=1 // pred_check_branch
      %11 = sbr.rel (0) target = $region5
    $region4: #{soft_cesa.1} parent=1 // pred_region
      _
    $region5: #{soft_cesa.1} parent=1 // pred_fallthru
      _
    // Predicated region
    $region6: #{soft_cesa.1} parent=1 // pred_check
      _
    $region7: #{soft_cesa.1} parent=1 // pred_check_branch
      %13 = sbr.rel (0) target = $region9
    $region8: #{soft_cesa.1} parent=1 // pred_region
      _
    $region9: #{soft_cesa.1} parent=1 // pred_fallthru
      _
    // Predicated region
    $region10: #{soft_cesa.1} parent=1 // pred_check
      _
    $region11: #{soft_cesa.1} parent=1 // pred_check_branch
      %15 = sbr.rel (0) target = $region13
    $region12: #{soft_cesa.1} parent=1 // pred_region
      %s17 = ssub.s32 24576, 24576
      %18 = vsyncadd [#allocation3], %s17
      %s19 = sshll.u32 [#allocation2], 4
      %s20 = int_to_ptr.vmem [resolvable:$true] %s19
      %25 = dma.hbm_to_vmem [thread:$0]  %s2, 24576, %s20, [#allocation3], 256, 256, 16
    $region13: #{soft_cesa.1} parent=1 // pred_fallthru
      _
    // Predicated region
    $region14: #{soft_cesa.1} parent=1 // pred_check
      _
    $region15: #{soft_cesa.1} parent=1 // pred_check_branch
      %27 = sbr.rel (0) target = $region17
    $region16: #{soft_cesa.1} parent=1 // pred_region
      _
    $region17: #{soft_cesa.1} parent=1 // pred_fallthru
      _
    // Predicated region
    $region18: #{soft_cesa.1} parent=1 // pred_check
      _
    $region19: #{soft_cesa.1} parent=1 // pred_check_branch
      %29 = sbr.rel (0) target = $region21
    $region20: #{soft_cesa.1} parent=1 // pred_region
      %30 = dma.done [#allocation3], 24576
    $region21: #{soft_cesa.1} parent=1 // pred_fallthru
      _
    %v31 = vld [vmem:[%s0] sm:$0xf]
    %v32 = vld [vmem:[%s0 + $0x4] sm:$0xf]
    %v33 = vmax.f32 %v31, %v32
    %v34 = vadd.f32 %v31, %v32
    %v35 = vld [vmem:[%s0 + $0x8] sm:$0xf]
    %v36 = vmax.f32 %v33, %v35
    %v37 = vadd.f32 %v34, %v35
    %v38 = vld [vmem:[%s0 + $0xc] sm:$0xf]
    %v39 = vmax.f32 %v36, %v38
    %v40 = vadd.f32 %v37, %v38
    %v41 = vmul.f32 %v40, 0.25
    %v42 = vld [vmem:[%s1] sm:$0xf]
    %v43 = vmul.f32 %v41, %v42
    %v46 = vunpack.c.l.s4 1983009808
    %v47 = vunpack.c.0.s8 %v46
    %v48 = vlaneseq
    %v49 = vshrl.u32 %v48, 7
    %v50 = vsub.s32 %v47, %v49
    %v51 = vrot.slane %v39, %v50
    %v52 = vcombine.high %v51, %v51
    %v57 = vunpack.c.l.s4 1983009808
    %v58 = vunpack.c.0.s8 %v57
    %v59 = vlaneseq
    %v60 = vshrl.u32 %v59, 7
    %v61 = vsub.s32 %v58, %v60
    %v62 = vrot.slane %v41, %v61
    %v63 = vcombine.high %v62, %v62
    %v68 = vunpack.c.l.s4 1983009808
    %v69 = vunpack.c.0.s8 %v68
    %v70 = vlaneseq
    %v71 = vshrl.u32 %v70, 7
    %v72 = vsub.s32 %v69, %v71
    %v73 = vrot.slane %v43, %v72
    %v74 = vcombine.high %v73, %v73
    %v77 = vld [vmem:[#allocation2] sm:$0xff]
    %v78 = vld [vmem:[#allocation2 + $0x8] sm:$0xff]
    %v79 = vld [vmem:[#allocation2 + $0x10] sm:$0xff]
    %v80 = vld [vmem:[#allocation2 + $0x18] sm:$0xff]
    %v81 = vld [vmem:[#allocation2 + $0x20] sm:$0xff]
    %v82 = vld [vmem:[#allocation2 + $0x28] sm:$0xff]
    %v83 = vld [vmem:[#allocation2 + $0x30] sm:$0xff]
    %v84 = vld [vmem:[#allocation2 + $0x38] sm:$0xff]
    %v85 = vld [vmem:[#allocation2 + $0x40] sm:$0xff]
    %v86 = vld [vmem:[#allocation2 + $0x48] sm:$0xff]
    %v87 = vld [vmem:[#allocation2 + $0x50] sm:$0xff]
    %v88 = vld [vmem:[#allocation2 + $0x58] sm:$0xff]
    %v89 = vld [vmem:[#allocation2 + $0x60] sm:$0xff]
    %v90 = vld [vmem:[#allocation2 + $0x68] sm:$0xff]
    %v91 = vld [vmem:[#allocation2 + $0x70] sm:$0xff]
    %v92 = vld [vmem:[#allocation2 + $0x78] sm:$0xff]
    %v93 = vld [vmem:[#allocation2 + $0x80] sm:$0xff]
    %v94 = vld [vmem:[#allocation2 + $0x88] sm:$0xff]
    %v95 = vld [vmem:[#allocation2 + $0x90] sm:$0xff]
    %v96 = vld [vmem:[#allocation2 + $0x98] sm:$0xff]
    %v97 = vld [vmem:[#allocation2 + $0xa0] sm:$0xff]
    %v98 = vld [vmem:[#allocation2 + $0xa8] sm:$0xff]
    %v99 = vld [vmem:[#allocation2 + $0xb0] sm:$0xff]
    %v100 = vld [vmem:[#allocation2 + $0xb8] sm:$0xff]
    %v101 = vld [vmem:[#allocation2 + $0xc0] sm:$0xff]
    %v102 = vld [vmem:[#allocation2 + $0xc8] sm:$0xff]
    %v103 = vld [vmem:[#allocation2 + $0xd0] sm:$0xff]
    %v104 = vld [vmem:[#allocation2 + $0xd8] sm:$0xff]
    %v105 = vld [vmem:[#allocation2 + $0xe0] sm:$0xff]
    %v106 = vld [vmem:[#allocation2 + $0xe8] sm:$0xff]
    %v107 = vld [vmem:[#allocation2 + $0xf0] sm:$0xff]
    %v108 = vld [vmem:[#allocation2 + $0xf8] sm:$0xff]
    %v109 = vld [vmem:[#allocation2 + $0x100] sm:$0xff]
    %v110 = vld [vmem:[#allocation2 + $0x108] sm:$0xff]
    %v111 = vld [vmem:[#allocation2 + $0x110] sm:$0xff]
    %v112 = vld [vmem:[#allocation2 + $0x118] sm:$0xff]
    %v113 = vld [vmem:[#allocation2 + $0x120] sm:$0xff]
    %v114 = vld [vmem:[#allocation2 + $0x128] sm:$0xff]
    %v115 = vld [vmem:[#allocation2 + $0x130] sm:$0xff]
    %v116 = vld [vmem:[#allocation2 + $0x138] sm:$0xff]
    %v117 = vld [vmem:[#allocation2 + $0x140] sm:$0xff]
    %v118 = vld [vmem:[#allocation2 + $0x148] sm:$0xff]
    %v119 = vld [vmem:[#allocation2 + $0x150] sm:$0xff]
    %v120 = vld [vmem:[#allocation2 + $0x158] sm:$0xff]
    %v121 = vld [vmem:[#allocation2 + $0x160] sm:$0xff]
    %v122 = vld [vmem:[#allocation2 + $0x168] sm:$0xff]
    %v123 = vld [vmem:[#allocation2 + $0x170] sm:$0xff]
    %v124 = vld [vmem:[#allocation2 + $0x178] sm:$0xff]
    %v125 = vld [vmem:[#allocation2 + $0x180] sm:$0xff]
    %v126 = vld [vmem:[#allocation2 + $0x188] sm:$0xff]
    %v127 = vld [vmem:[#allocation2 + $0x190] sm:$0xff]
    %v128 = vld [vmem:[#allocation2 + $0x198] sm:$0xff]
    %v129 = vld [vmem:[#allocation2 + $0x1a0] sm:$0xff]
    %v130 = vld [vmem:[#allocation2 + $0x1a8] sm:$0xff]
    %v131 = vld [vmem:[#allocation2 + $0x1b0] sm:$0xff]
    %v132 = vld [vmem:[#allocation2 + $0x1b8] sm:$0xff]
    %v133 = vld [vmem:[#allocation2 + $0x1c0] sm:$0xff]
    %v134 = vld [vmem:[#allocation2 + $0x1c8] sm:$0xff]
    %v135 = vld [vmem:[#allocation2 + $0x1d0] sm:$0xff]
    %v136 = vld [vmem:[#allocation2 + $0x1d8] sm:$0xff]
    %v137 = vld [vmem:[#allocation2 + $0x1e0] sm:$0xff]
    %v138 = vld [vmem:[#allocation2 + $0x1e8] sm:$0xff]
    %v139 = vld [vmem:[#allocation2 + $0x1f0] sm:$0xff]
    %v140 = vld [vmem:[#allocation2 + $0x1f8] sm:$0xff]
    %v141 = vld [vmem:[#allocation2 + $0x200] sm:$0xff]
    %v142 = vld [vmem:[#allocation2 + $0x208] sm:$0xff]
    %v143 = vld [vmem:[#allocation2 + $0x210] sm:$0xff]
    %v144 = vld [vmem:[#allocation2 + $0x218] sm:$0xff]
    %v145 = vld [vmem:[#allocation2 + $0x220] sm:$0xff]
    %v146 = vld [vmem:[#allocation2 + $0x228] sm:$0xff]
    %v147 = vld [vmem:[#allocation2 + $0x230] sm:$0xff]
    %v148 = vld [vmem:[#allocation2 + $0x238] sm:$0xff]
    %v149 = vld [vmem:[#allocation2 + $0x240] sm:$0xff]
    %v150 = vld [vmem:[#allocation2 + $0x248] sm:$0xff]
    %v151 = vld [vmem:[#allocation2 + $0x250] sm:$0xff]
    %v152 = vld [vmem:[#allocation2 + $0x258] sm:$0xff]
    %v153 = vld [vmem:[#allocation2 + $0x260] sm:$0xff]
    %v154 = vld [vmem:[#allocation2 + $0x268] sm:$0xff]
    %v155 = vld [vmem:[#allocation2 + $0x270] sm:$0xff]
    %v156 = vld [vmem:[#allocation2 + $0x278] sm:$0xff]
    %v157 = vld [vmem:[#allocation2 + $0x280] sm:$0xff]
    %v158 = vld [vmem:[#allocation2 + $0x288] sm:$0xff]
    %v159 = vld [vmem:[#allocation2 + $0x290] sm:$0xff]
    %v160 = vld [vmem:[#allocation2 + $0x298] sm:$0xff]
    %v161 = vld [vmem:[#allocation2 + $0x2a0] sm:$0xff]
    %v162 = vld [vmem:[#allocation2 + $0x2a8] sm:$0xff]
    %v163 = vld [vmem:[#allocation2 + $0x2b0] sm:$0xff]
    %v164 = vld [vmem:[#allocation2 + $0x2b8] sm:$0xff]
    %v165 = vld [vmem:[#allocation2 + $0x2c0] sm:$0xff]
    %v166 = vld [vmem:[#allocation2 + $0x2c8] sm:$0xff]
    %v167 = vld [vmem:[#allocation2 + $0x2d0] sm:$0xff]
    %v168 = vld [vmem:[#allocation2 + $0x2d8] sm:$0xff]
    %v169 = vld [vmem:[#allocation2 + $0x2e0] sm:$0xff]
    %v170 = vld [vmem:[#allocation2 + $0x2e8] sm:$0xff]
    %v171 = vld [vmem:[#allocation2 + $0x2f0] sm:$0xff]
    %v172 = vld [vmem:[#allocation2 + $0x2f8] sm:$0xff]
    %v173 = vld [vmem:[#allocation2 + $0x300] sm:$0xff]
    %v174 = vld [vmem:[#allocation2 + $0x308] sm:$0xff]
    %v175 = vld [vmem:[#allocation2 + $0x310] sm:$0xff]
    %v176 = vld [vmem:[#allocation2 + $0x318] sm:$0xff]
    %v177 = vld [vmem:[#allocation2 + $0x320] sm:$0xff]
    %v178 = vld [vmem:[#allocation2 + $0x328] sm:$0xff]
    %v179 = vld [vmem:[#allocation2 + $0x330] sm:$0xff]
    %v180 = vld [vmem:[#allocation2 + $0x338] sm:$0xff]
    %v181 = vld [vmem:[#allocation2 + $0x340] sm:$0xff]
    %v182 = vld [vmem:[#allocation2 + $0x348] sm:$0xff]
    %v183 = vld [vmem:[#allocation2 + $0x350] sm:$0xff]
    %v184 = vld [vmem:[#allocation2 + $0x358] sm:$0xff]
    %v185 = vld [vmem:[#allocation2 + $0x360] sm:$0xff]
    %v186 = vld [vmem:[#allocation2 + $0x368] sm:$0xff]
    %v187 = vld [vmem:[#allocation2 + $0x370] sm:$0xff]
    %v188 = vld [vmem:[#allocation2 + $0x378] sm:$0xff]
    %v189 = vld [vmem:[#allocation2 + $0x380] sm:$0xff]
    %v190 = vld [vmem:[#allocation2 + $0x388] sm:$0xff]
    %v191 = vld [vmem:[#allocation2 + $0x390] sm:$0xff]
    %v192 = vld [vmem:[#allocation2 + $0x398] sm:$0xff]
    %v193 = vld [vmem:[#allocation2 + $0x3a0] sm:$0xff]
    %v194 = vld [vmem:[#allocation2 + $0x3a8] sm:$0xff]
    %v195 = vld [vmem:[#allocation2 + $0x3b0] sm:$0xff]
    %v196 = vld [vmem:[#allocation2 + $0x3b8] sm:$0xff]
    %v197 = vld [vmem:[#allocation2 + $0x3c0] sm:$0xff]
    %v198 = vld [vmem:[#allocation2 + $0x3c8] sm:$0xff]
    %v199 = vld [vmem:[#allocation2 + $0x3d0] sm:$0xff]
    %v200 = vld [vmem:[#allocation2 + $0x3d8] sm:$0xff]
    %v201 = vld [vmem:[#allocation2 + $0x3e0] sm:$0xff]
    %v202 = vld [vmem:[#allocation2 + $0x3e8] sm:$0xff]
    %v203 = vld [vmem:[#allocation2 + $0x3f0] sm:$0xff]
    %v204 = vld [vmem:[#allocation2 + $0x3f8] sm:$0xff]
    %v205 = vld [vmem:[#allocation2 + $0x400] sm:$0xff]
    %v206 = vld [vmem:[#allocation2 + $0x408] sm:$0xff]
    %v207 = vld [vmem:[#allocation2 + $0x410] sm:$0xff]
    %v208 = vld [vmem:[#allocation2 + $0x418] sm:$0xff]
    %v209 = vld [vmem:[#allocation2 + $0x420] sm:$0xff]
    %v210 = vld [vmem:[#allocation2 + $0x428] sm:$0xff]
    %v211 = vld [vmem:[#allocation2 + $0x430] sm:$0xff]
    %v212 = vld [vmem:[#allocation2 + $0x438] sm:$0xff]
    %v213 = vld [vmem:[#allocation2 + $0x440] sm:$0xff]
    %v214 = vld [vmem:[#allocation2 + $0x448] sm:$0xff]
    %v215 = vld [vmem:[#allocation2 + $0x450] sm:$0xff]
    %v216 = vld [vmem:[#allocation2 + $0x458] sm:$0xff]
    %v217 = vld [vmem:[#allocation2 + $0x460] sm:$0xff]
    %v218 = vld [vmem:[#allocation2 + $0x468] sm:$0xff]
    %v219 = vld [vmem:[#allocation2 + $0x470] sm:$0xff]
    %v220 = vld [vmem:[#allocation2 + $0x478] sm:$0xff]
    %v221 = vld [vmem:[#allocation2 + $0x480] sm:$0xff]
    %v222 = vld [vmem:[#allocation2 + $0x488] sm:$0xff]
    %v223 = vld [vmem:[#allocation2 + $0x490] sm:$0xff]
    %v224 = vld [vmem:[#allocation2 + $0x498] sm:$0xff]
    %v225 = vld [vmem:[#allocation2 + $0x4a0] sm:$0xff]
    %v226 = vld [vmem:[#allocation2 + $0x4a8] sm:$0xff]
    %v227 = vld [vmem:[#allocation2 + $0x4b0] sm:$0xff]
    %v228 = vld [vmem:[#allocation2 + $0x4b8] sm:$0xff]
    %v229 = vld [vmem:[#allocation2 + $0x4c0] sm:$0xff]
    %v230 = vld [vmem:[#allocation2 + $0x4c8] sm:$0xff]
    %v231 = vld [vmem:[#allocation2 + $0x4d0] sm:$0xff]
    %v232 = vld [vmem:[#allocation2 + $0x4d8] sm:$0xff]
    %v233 = vld [vmem:[#allocation2 + $0x4e0] sm:$0xff]
    %v234 = vld [vmem:[#allocation2 + $0x4e8] sm:$0xff]
    %v235 = vld [vmem:[#allocation2 + $0x4f0] sm:$0xff]
    %v236 = vld [vmem:[#allocation2 + $0x4f8] sm:$0xff]
    %v237 = vld [vmem:[#allocation2 + $0x500] sm:$0xff]
    %v238 = vld [vmem:[#allocation2 + $0x508] sm:$0xff]
    %v239 = vld [vmem:[#allocation2 + $0x510] sm:$0xff]
    %v240 = vld [vmem:[#allocation2 + $0x518] sm:$0xff]
    %v241 = vld [vmem:[#allocation2 + $0x520] sm:$0xff]
    %v242 = vld [vmem:[#allocation2 + $0x528] sm:$0xff]
    %v243 = vld [vmem:[#allocation2 + $0x530] sm:$0xff]
    %v244 = vld [vmem:[#allocation2 + $0x538] sm:$0xff]
    %v245 = vld [vmem:[#allocation2 + $0x540] sm:$0xff]
    %v246 = vld [vmem:[#allocation2 + $0x548] sm:$0xff]
    %v247 = vld [vmem:[#allocation2 + $0x550] sm:$0xff]
    %v248 = vld [vmem:[#allocation2 + $0x558] sm:$0xff]
    %v249 = vld [vmem:[#allocation2 + $0x560] sm:$0xff]
    %v250 = vld [vmem:[#allocation2 + $0x568] sm:$0xff]
    %v251 = vld [vmem:[#allocation2 + $0x570] sm:$0xff]
    %v252 = vld [vmem:[#allocation2 + $0x578] sm:$0xff]
    %v253 = vld [vmem:[#allocation2 + $0x580] sm:$0xff]
    %v254 = vld [vmem:[#allocation2 + $0x588] sm:$0xff]
    %v255 = vld [vmem:[#allocation2 + $0x590] sm:$0xff]
    %v256 = vld [vmem:[#allocation2 + $0x598] sm:$0xff]
    %v257 = vld [vmem:[#allocation2 + $0x5a0] sm:$0xff]
    %v258 = vld [vmem:[#allocation2 + $0x5a8] sm:$0xff]
    %v259 = vld [vmem:[#allocation2 + $0x5b0] sm:$0xff]
    %v260 = vld [vmem:[#allocation2 + $0x5b8] sm:$0xff]
    %v261 = vld [vmem:[#allocation2 + $0x5c0] sm:$0xff]
    %v262 = vld [vmem:[#allocation2 + $0x5c8] sm:$0xff]
    %v263 = vld [vmem:[#allocation2 + $0x5d0] sm:$0xff]
    %v264 = vld [vmem:[#allocation2 + $0x5d8] sm:$0xff]
    %v265 = vld [vmem:[#allocation2 + $0x5e0] sm:$0xff]
    %v266 = vld [vmem:[#allocation2 + $0x5e8] sm:$0xff]
    %v267 = vld [vmem:[#allocation2 + $0x5f0] sm:$0xff]
    %v268 = vld [vmem:[#allocation2 + $0x5f8] sm:$0xff]
    %v269 = vld [vmem:[%s3] sm:$0x3]
    %v271 = vlaneseq
    %v272 = vshrl.u32 %v271, 7
    %v273 = vsub.s32 0, %v272
    %v274 = vrot.slane %v269, %v273
    %v275 = vlaneseq
    %v276 = vshrl.u32 %v275, 7
    %v277 = vsub.s32 1, %v276
    %v278 = vrot.slane %v269, %v277
    %281 = vmatprep.subr.mxu0 %v108
    %282 = vmatpush1.msra.mxu0 %v107
    %283 = vmatprep.subr.mxu0 %v106
    %284 = vmatpush1.msra.mxu0 %v105
    %285 = vmatprep.subr.mxu0 %v104
    %286 = vmatpush1.msra.mxu0 %v103
    %287 = vmatprep.subr.mxu0 %v102
    %288 = vmatpush1.msra.mxu0 %v101
    %289 = vmatprep.subr.mxu0 %v100
    %290 = vmatpush1.msra.mxu0 %v99
    %291 = vmatprep.subr.mxu0 %v98
    %292 = vmatpush1.msra.mxu0 %v97
    %293 = vmatprep.subr.mxu0 %v96
    %294 = vmatpush1.msra.mxu0 %v95
    %295 = vmatprep.subr.mxu0 %v94
    %296 = vmatpush1.msra.mxu0 %v93
    %297 = vmatprep.subr.mxu0 %v92
    %298 = vmatpush1.msra.mxu0 %v91
    %299 = vmatprep.subr.mxu0 %v90
    %300 = vmatpush1.msra.mxu0 %v89
    %301 = vmatprep.subr.mxu0 %v88
    %302 = vmatpush1.msra.mxu0 %v87
    %303 = vmatprep.subr.mxu0 %v86
    %304 = vmatpush1.msra.mxu0 %v85
    %305 = vmatprep.subr.mxu0 %v84
    %306 = vmatpush1.msra.mxu0 %v83
    %307 = vmatprep.subr.mxu0 %v82
    %308 = vmatpush1.msra.mxu0 %v81
    %309 = vmatprep.subr.mxu0 %v80
    %310 = vmatpush1.msra.mxu0 %v79
    %311 = vmatprep.subr.mxu0 %v78
    %312 = vmatpush1.msra.mxu0 %v77
    %313 = vmatprep.subr.mxu0 %v140
    %314 = vmatpush2.msra.mxu0 %v139
    %315 = vmatprep.subr.mxu0 %v138
    %316 = vmatpush2.msra.mxu0 %v137
    %317 = vmatprep.subr.mxu0 %v136
    %318 = vmatpush2.msra.mxu0 %v135
    %319 = vmatprep.subr.mxu0 %v134
    %320 = vmatpush2.msra.mxu0 %v133
    %321 = vmatprep.subr.mxu0 %v132
    %322 = vmatpush2.msra.mxu0 %v131
    %323 = vmatprep.subr.mxu0 %v130
    %324 = vmatpush2.msra.mxu0 %v129
    %325 = vmatprep.subr.mxu0 %v128
    %326 = vmatpush2.msra.mxu0 %v127
    %327 = vmatprep.subr.mxu0 %v126
    %328 = vmatpush2.msra.mxu0 %v125
    %329 = vmatprep.subr.mxu0 %v124
    %330 = vmatpush2.msra.mxu0 %v123
    %331 = vmatprep.subr.mxu0 %v122
    %332 = vmatpush2.msra.mxu0 %v121
    %333 = vmatprep.subr.mxu0 %v120
    %334 = vmatpush2.msra.mxu0 %v119
    %335 = vmatprep.subr.mxu0 %v118
    %336 = vmatpush2.msra.mxu0 %v117
    %337 = vmatprep.subr.mxu0 %v116
    %338 = vmatpush2.msra.mxu0 %v115
    %339 = vmatprep.subr.mxu0 %v114
    %340 = vmatpush2.msra.mxu0 %v113
    %341 = vmatprep.subr.mxu0 %v112
    %342 = vmatpush2.msra.mxu0 %v111
    %343 = vmatprep.subr.mxu0 %v110
    %344 = vmatpush2.msra.mxu0 %v109
    %345 = vmatprep.mubr.f32.mxu0 %v52
    %346 = vmatmul.mubr.f32.gmra.mxu0 %v51
    %v347 = vpop.f32.mrf.mxu0
    %v348 = vadd.f32 %v274, %v347
    %v349 = vpop.f32.mrf.mxu0
    %v350 = vadd.f32 %v278, %v349
    %351 = vdwg.mxu0
    %352 = vmatprep.subr.mxu0 %v172
    %353 = vmatpush1.msra.mxu0 %v171
    %354 = vmatprep.subr.mxu0 %v170
    %355 = vmatpush1.msra.mxu0 %v169
    %356 = vmatprep.subr.mxu0 %v168
    %357 = vmatpush1.msra.mxu0 %v167
    %358 = vmatprep.subr.mxu0 %v166
    %359 = vmatpush1.msra.mxu0 %v165
    %360 = vmatprep.subr.mxu0 %v164
    %361 = vmatpush1.msra.mxu0 %v163
    %362 = vmatprep.subr.mxu0 %v162
    %363 = vmatpush1.msra.mxu0 %v161
    %364 = vmatprep.subr.mxu0 %v160
    %365 = vmatpush1.msra.mxu0 %v159
    %366 = vmatprep.subr.mxu0 %v158
    %367 = vmatpush1.msra.mxu0 %v157
    %368 = vmatprep.subr.mxu0 %v156
    %369 = vmatpush1.msra.mxu0 %v155
    %370 = vmatprep.subr.mxu0 %v154
    %371 = vmatpush1.msra.mxu0 %v153
    %372 = vmatprep.subr.mxu0 %v152
    %373 = vmatpush1.msra.mxu0 %v151
    %374 = vmatprep.subr.mxu0 %v150
    %375 = vmatpush1.msra.mxu0 %v149
    %376 = vmatprep.subr.mxu0 %v148
    %377 = vmatpush1.msra.mxu0 %v147
    %378 = vmatprep.subr.mxu0 %v146
    %379 = vmatpush1.msra.mxu0 %v145
    %380 = vmatprep.subr.mxu0 %v144
    %381 = vmatpush1.msra.mxu0 %v143
    %382 = vmatprep.subr.mxu0 %v142
    %383 = vmatpush1.msra.mxu0 %v141
    %384 = vmatprep.subr.mxu0 %v204
    %385 = vmatpush2.msra.mxu0 %v203
    %386 = vmatprep.subr.mxu0 %v202
    %387 = vmatpush2.msra.mxu0 %v201
    %388 = vmatprep.subr.mxu0 %v200
    %389 = vmatpush2.msra.mxu0 %v199
    %390 = vmatprep.subr.mxu0 %v198
    %391 = vmatpush2.msra.mxu0 %v197
    %392 = vmatprep.subr.mxu0 %v196
    %393 = vmatpush2.msra.mxu0 %v195
    %394 = vmatprep.subr.mxu0 %v194
    %395 = vmatpush2.msra.mxu0 %v193
    %396 = vmatprep.subr.mxu0 %v192
    %397 = vmatpush2.msra.mxu0 %v191
    %398 = vmatprep.subr.mxu0 %v190
    %399 = vmatpush2.msra.mxu0 %v189
    %400 = vmatprep.subr.mxu0 %v188
    %401 = vmatpush2.msra.mxu0 %v187
    %402 = vmatprep.subr.mxu0 %v186
    %403 = vmatpush2.msra.mxu0 %v185
    %404 = vmatprep.subr.mxu0 %v184
    %405 = vmatpush2.msra.mxu0 %v183
    %406 = vmatprep.subr.mxu0 %v182
    %407 = vmatpush2.msra.mxu0 %v181
    %408 = vmatprep.subr.mxu0 %v180
    %409 = vmatpush2.msra.mxu0 %v179
    %410 = vmatprep.subr.mxu0 %v178
    %411 = vmatpush2.msra.mxu0 %v177
    %412 = vmatprep.subr.mxu0 %v176
    %413 = vmatpush2.msra.mxu0 %v175
    %414 = vmatprep.subr.mxu0 %v174
    %415 = vmatpush2.msra.mxu0 %v173
    %416 = vmatprep.mubr.f32.mxu0 %v63
    %417 = vmatmul.mubr.f32.gmra.mxu0 %v62
    %v418 = vpop.f32.mrf.mxu0
    %v419 = vadd.f32 %v348, %v418
    %v420 = vpop.f32.mrf.mxu0
    %v421 = vadd.f32 %v350, %v420
    %422 = vdwg.mxu0
    %423 = vmatprep.subr.mxu0 %v236
    %424 = vmatpush1.msra.mxu0 %v235
    %425 = vmatprep.subr.mxu0 %v234
    %426 = vmatpush1.msra.mxu0 %v233
    %427 = vmatprep.subr.mxu0 %v232
    %428 = vmatpush1.msra.mxu0 %v231
    %429 = vmatprep.subr.mxu0 %v230
    %430 = vmatpush1.msra.mxu0 %v229
    %431 = vmatprep.subr.mxu0 %v228
    %432 = vmatpush1.msra.mxu0 %v227
    %433 = vmatprep.subr.mxu0 %v226
    %434 = vmatpush1.msra.mxu0 %v225
    %435 = vmatprep.subr.mxu0 %v224
    %436 = vmatpush1.msra.mxu0 %v223
    %437 = vmatprep.subr.mxu0 %v222
    %438 = vmatpush1.msra.mxu0 %v221
    %439 = vmatprep.subr.mxu0 %v220
    %440 = vmatpush1.msra.mxu0 %v219
    %441 = vmatprep.subr.mxu0 %v218
    %442 = vmatpush1.msra.mxu0 %v217
    %443 = vmatprep.subr.mxu0 %v216
    %444 = vmatpush1.msra.mxu0 %v215
    %445 = vmatprep.subr.mxu0 %v214
    %446 = vmatpush1.msra.mxu0 %v213
    %447 = vmatprep.subr.mxu0 %v212
    %448 = vmatpush1.msra.mxu0 %v211
    %449 = vmatprep.subr.mxu0 %v210
    %450 = vmatpush1.msra.mxu0 %v209
    %451 = vmatprep.subr.mxu0 %v208
    %452 = vmatpush1.msra.mxu0 %v207
    %453 = vmatprep.subr.mxu0 %v206
    %454 = vmatpush1.msra.mxu0 %v205
    %455 = vmatprep.subr.mxu0 %v268
    %456 = vmatpush2.msra.mxu0 %v267
    %457 = vmatprep.subr.mxu0 %v266
    %458 = vmatpush2.msra.mxu0 %v265
    %459 = vmatprep.subr.mxu0 %v264
    %460 = vmatpush2.msra.mxu0 %v263
    %461 = vmatprep.subr.mxu0 %v262
    %462 = vmatpush2.msra.mxu0 %v261
    %463 = vmatprep.subr.mxu0 %v260
    %464 = vmatpush2.msra.mxu0 %v259
    %465 = vmatprep.subr.mxu0 %v258
    %466 = vmatpush2.msra.mxu0 %v257
    %467 = vmatprep.subr.mxu0 %v256
    %468 = vmatpush2.msra.mxu0 %v255
    %469 = vmatprep.subr.mxu0 %v254
    %470 = vmatpush2.msra.mxu0 %v253
    %471 = vmatprep.subr.mxu0 %v252
    %472 = vmatpush2.msra.mxu0 %v251
    %473 = vmatprep.subr.mxu0 %v250
    %474 = vmatpush2.msra.mxu0 %v249
    %475 = vmatprep.subr.mxu0 %v248
    %476 = vmatpush2.msra.mxu0 %v247
    %477 = vmatprep.subr.mxu0 %v246
    %478 = vmatpush2.msra.mxu0 %v245
    %479 = vmatprep.subr.mxu0 %v244
    %480 = vmatpush2.msra.mxu0 %v243
    %481 = vmatprep.subr.mxu0 %v242
    %482 = vmatpush2.msra.mxu0 %v241
    %483 = vmatprep.subr.mxu0 %v240
    %484 = vmatpush2.msra.mxu0 %v239
    %485 = vmatprep.subr.mxu0 %v238
    %486 = vmatpush2.msra.mxu0 %v237
    %487 = vmatprep.mubr.f32.mxu0 %v74
    %488 = vmatmul.mubr.f32.gmra.mxu0 %v73
    %v489 = vpop.f32.mrf.mxu0
    %v490 = vadd.f32 %v419, %v489
    %v491 = vpop.f32.mrf.mxu0
    %v492 = vadd.f32 %v421, %v491
    %493 = vdwg.mxu0
    %v494 = vxor.u32 %v490, 2147483648
    %v495 = vxor.u32 %v492, 2147483648
    %v496 = vmul.f32 %v494, 1.442695
    %v497 = vpow.pop %v496
    %v498 = vmul.f32 %v495, 1.442695
    %v499 = vpow.pop %v498
    %v500 = vadd.f32 %v497, 1.0
    %v501 = vadd.f32 %v499, 1.0
    %v502 = vrcp.pop %v500
    %v503 = vmul.f32 1.0, %v502
    %v504 = vrcp.pop %v501
    %v505 = vmul.f32 1.0, %v504
    %v508 = vcombine.low %v503, %v505
    %v510 = vunpack.c.l.s4 1983009808
    %v511 = vunpack.c.0.s8 %v510
    %v512 = vlaneseq
    %v513 = vshrl.u32 %v512, 7
    %v514 = vsub.s32 %v511, %v513
    %v515 = vrot.slane %v508, %v514
    %517 = vst [vmem:[%s4] sm:$0xf] %v515
    // Predicated region
    $region22: #{soft_cesa.1} parent=1 // pred_check
      _
    $region23: #{soft_cesa.1} parent=1 // pred_check_branch
      %519 = sbr.rel (0) target = $region25
    $region24: #{soft_cesa.1} parent=1 // pred_region
      _
    $region25: #{soft_cesa.1} parent=1 // pred_fallthru
      _
    // Predicated region
    $region26: #{soft_cesa.1} parent=1 // pred_check
      _
    $region27: #{soft_cesa.1} parent=1 // pred_check_branch
      %521 = sbr.rel (0) target = $region29
    $region28: #{soft_cesa.1} parent=1 // pred_region
      _
    $region29: #{soft_cesa.1} parent=1 // pred_fallthru
      _
    %522 = vsyncpa [#allocation3], 1

</llo_original>
